<compile_context>
chip_gen: v7x
topology: tpu7x:2x2x1
jax: 0.10.0
libtpu: 0.0.40
codegen_flags: <defaults>
</compile_context>

<pallas_src>
import jax
import jax.numpy as jnp
from jax.experimental import pallas as pl
from jax.experimental.pallas import tpu as pltpu


def _round_up(x, m):
    return (x + m - 1) // m * m


def _cdiv(a, b):
    return (a + b - 1) // b


def _default_fold():
    """Fold factor so the folded width (fold * channels) fills the MXU.

    128-wide (fold=4 for 32 channels) saturates v5e's 128x128 MXU; 256-wide
    (fold=8) fills v6e/v7x's 256x256 MXU. Replicated weights stay tiny
    (<= 128 KiB/layer in bf16).
    """
    try:
        kind = jax.devices()[0].device_kind.lower()
    except Exception:
        return 8
    if "v5" in kind and ("lite" in kind or "v5e" in kind):
        return 4
    return 8


def _make_linknn_kernel(num_layers):
    """Fused (x_i * x_j) -> MLP -> sigmoid on lane-folded rows.

    Ref order: xi, xj, (w0, b0, ..., w_{L-1}, b_{L-1}), out
      xi, xj : (rows_f, fold*in)        f32
      w_l    : (fold*d_in, fold*d_out)  bf16, block-diagonal kron(I_fold, W_l^T)
      b_l    : (1, fold*d_out)          f32, bias tiled fold times
      out    : (rows_f, fold*out)       f32
    """

    def kernel(*refs):
        xi_ref, xj_ref = refs[0], refs[1]
        o_ref = refs[-1]
        p = refs[2:-1]

        # Pair product in f32 (inputs arrive un-cast); a single bf16 rounding
        # right before the MXU feed.
        x = xi_ref[...] * xj_ref[...]
        xb = x.astype(jnp.bfloat16)

        # Hidden layers: lane-folded bf16 matmul against block-diagonal
        # weights, f32 MXU accumulate, f32 bias + relu on the VPU.
        for l in range(num_layers - 1):
            w = p[2 * l][...]        # (fold*in, fold*out) bf16
            b = p[2 * l + 1][...]    # (1, fold*out)       f32
            h = jnp.dot(xb, w, preferred_element_type=jnp.float32) + b
            h = jnp.maximum(h, 0.0)
            # TODO(synk): F.dropout is identity in eval mode; training-mode
            # dropout (pltpu.prng_random_bits masking) is not implemented.
            xb = h.astype(jnp.bfloat16)

        # Final layer in normal orientation (no NT transpose, no per-step
        # stationary-operand reload); the (rows_f, fold*out) store is tiny.
        w = p[2 * (num_layers - 1)][...]       # (fold*hidden, fold*out) bf16
        b = p[2 * (num_layers - 1) + 1][...]   # (1, fold*out)           f32
        logits = jnp.dot(xb, w, preferred_element_type=jnp.float32) + b
        o_ref[...] = jax.nn.sigmoid(logits)

    return kernel


def link_nn_forward(x_i, x_j, params, *, row_tile=4096, fold=None):
    """Run the fused LinkNN kernel.

    x_i, x_j : (N, in_channels) float32
    params   : list of (W, b) in PyTorch-native layout: W (out, in), b (out,)
    returns  : (N, out_channels) float32 == sigmoid(MLP(x_i * x_j))
    """
    N, C_in = x_i.shape
    num_layers = len(params)
    out_channels = params[-1][0].shape[0]

    if fold is None:
        fold = _default_fold()
    fold = max(1, int(fold))

    # --- Lane-fold geometry --------------------------------------------------
    # Rows fold into the feature axis: (N, C) -> (rows_f, fold*C) (row-major,
    # so the reshape is free). Folded row block: multiple of 8 sublanes,
    # sized so the grid keeps ~>=8 steps (pipelining + megacore) but no more
    # than `row_tile` original rows per step.
    n_f = _cdiv(N, fold)
    target = _round_up(_cdiv(n_f, 8), 8)                    # aim for ~8 steps
    row_block_f = _round_up(min(max(row_tile // fold, 8), target), 8)
    grid0 = _cdiv(n_f, row_block_f)
    n_f_pad = grid0 * row_block_f
    N_pad = n_f_pad * fold

    # Inputs stay f32: no wrapper-side bf16 cast pass over HBM; the kernel
    # rounds to bf16 once after the pair product. Pad only the ragged tail.
    if N_pad != N:
        pad = ((0, N_pad - N), (0, 0))
        x_i = jnp.pad(x_i, pad)
        x_j = jnp.pad(x_j, pad)
    xif = x_i.reshape(n_f_pad, fold * C_in)
    xjf = x_j.reshape(n_f_pad, fold * C_in)

    # --- Parameter prep: block-diagonal bf16 weights, tiled f32 biases -------
    in_specs = [
        pl.BlockSpec((row_block_f, fold * C_in), lambda i: (i, 0)),
        pl.BlockSpec((row_block_f, fold * C_in), lambda i: (i, 0)),
    ]
    flat_params = []
    eye = jnp.eye(fold, dtype=jnp.bfloat16)
    for (w, b) in params:
        wt = jnp.asarray(w, jnp.float32).T.astype(jnp.bfloat16)   # (in, out)
        w_bd = jnp.kron(eye, wt)                                  # (fold*in, fold*out)
        b_t = jnp.tile(jnp.asarray(b, jnp.float32).reshape(1, -1), (1, fold))
        in_specs.append(pl.BlockSpec(w_bd.shape, lambda i: (0, 0)))
        in_specs.append(pl.BlockSpec(b_t.shape, lambda i: (0, 0)))
        flat_params.extend([w_bd, b_t])

    out_shape = jax.ShapeDtypeStruct((n_f_pad, fold * out_channels), jnp.float32)
    out_specs = pl.BlockSpec((row_block_f, fold * out_channels), lambda i: (i, 0))

    # Advisory cost estimate (counts the full block-diagonal matmul work the
    # MXU actually performs).
    dims = [C_in] + [p_[0].shape[0] for p_ in params]
    flops = N_pad * C_in
    for l in range(num_layers):
        flops += 2 * n_f_pad * (fold * dims[l]) * (fold * dims[l + 1])
    transcendentals = N_pad * out_channels
    bytes_accessed = (
        2 * N_pad * C_in * 4
        + sum(int(p_.size) * p_.dtype.itemsize for p_ in flat_params)
        + n_f_pad * fold * out_channels * 4
    )
    cost = pl.CostEstimate(flops=int(flops),
                           transcendentals=int(transcendentals),
                           bytes_accessed=int(bytes_accessed))

    # VMEM budget for the lane-dense folded tiles: double-buffered f32 inputs
    # and output, resident params, plus headroom for f32/bf16 intermediates.
    # Capped at 32 MiB (v7x scoped limit); v5e/v6e have plenty more.
    param_bytes = sum(int(p_.size) * p_.dtype.itemsize for p_ in flat_params)
    widest = fold * max(dims)
    per_step_bytes = (
        2 * 2 * row_block_f * fold * C_in * 4
        + 2 * row_block_f * fold * out_channels * 4
        + param_bytes
        + 6 * row_block_f * widest * 4
    )
    vmem_limit = int(min(32 * 2**20, max(2 * per_step_bytes, 8 * 2**20)))

    out_f = pl.pallas_call(
        _make_linknn_kernel(num_layers),
        out_shape=out_shape,
        grid=(grid0,),
        in_specs=in_specs,
        out_specs=out_specs,
        compiler_params=pltpu.CompilerParams(
            dimension_semantics=("parallel",),
            vmem_limit_bytes=vmem_limit,
        ),
        cost_estimate=cost,
    )(xif, xjf, *flat_params)

    # (rows_f, fold*out) unfolds row-major back to (N_pad, out); drop pad tail
    # (padded rows hold sigmoid(bias-path) garbage and must never be consumed).
    return out_f.reshape(N_pad, out_channels)[:N]


def init_linknn_params(key, in_channels, hidden_channels, out_channels, num_layers):
    """Deterministic synthetic init matching nn.Linear (PyTorch layout).

    Returns list of (W, b) with W shape (out, in), b shape (out,), float32.
    """
    dims = [in_channels] + [hidden_channels] * (num_layers - 1) + [out_channels]
    params = []
    for l in range(num_layers):
        key, kw, kb = jax.random.split(key, 3)
        bound = 1.0 / float(dims[l]) ** 0.5
        w = jax.random.uniform(kw, (dims[l + 1], dims[l]), jnp.float32, -bound, bound)
        b = jax.random.uniform(kb, (dims[l + 1],), jnp.float32, -bound, bound)
        params.append((w, b))
    return params


def link_nn_reference(x_i, x_j, params):
    """Pure-JAX f32 reference of the PyTorch forward (eval mode)."""
    x = x_i * x_j
    for (w, b) in params[:-1]:
        x = jnp.maximum(x @ w.T + b, 0.0)
    w, b = params[-1]
    return jax.nn.sigmoid(x @ w.T + b)


if __name__ == "__main__":
    # Small shapes consistent with the module: num_layers=3 MLP on pair features.
    N = 1000             # number of (i, j) pairs (non-multiple of tile: pads)
    in_channels = 32
    hidden_channels = 32
    out_channels = 1
    num_layers = 3
    dropout = 0.5        # identity in eval mode

    key = jax.random.PRNGKey(0)
    k_xi, k_xj, k_params = jax.random.split(key, 3)

    x_i = jax.random.normal(k_xi, (N, in_channels), jnp.float32)
    x_j = jax.random.normal(k_xj, (N, in_channels), jnp.float32)
    params = init_linknn_params(k_params, in_channels, hidden_channels,
                                out_channels, num_layers)

    out = link_nn_forward(x_i, x_j, params, row_tile=1024)
    out = jax.block_until_ready(out)

    ref = link_nn_reference(x_i, x_j, params)
    assert out.shape == (N, out_channels)
    err = float(jnp.max(jnp.abs(out - ref)))
    # bf16 matmul inputs with f32 accumulate (product computed in f32):
    # expect ~1e-3 abs error.
    assert err < 2e-2, f"mismatch vs reference: {err}"

    print("KERNEL_OK")
</pallas_src>

<mosaic_0001>
module attributes {stable_mosaic.version = 11 : i64} {
  func.func @kernel(%arg0: i32, %arg1: memref<16x256xf32, #tpu.memory_space<vmem>>, %arg2: memref<16x256xf32, #tpu.memory_space<vmem>>, %arg3: memref<256x256xbf16, #tpu.memory_space<vmem>>, %arg4: memref<1x256xf32, #tpu.memory_space<vmem>>, %arg5: memref<256x256xbf16, #tpu.memory_space<vmem>>, %arg6: memref<1x256xf32, #tpu.memory_space<vmem>>, %arg7: memref<256x8xbf16, #tpu.memory_space<vmem>>, %arg8: memref<1x8xf32, #tpu.memory_space<vmem>>, %arg9: memref<16x8xf32, #tpu.memory_space<vmem>>) attributes {dimension_semantics = [#tpu.dimension_semantics<parallel>], iteration_bounds = array<i64: 8>, scalar_prefetch = 0 : i64, scratch_operands = 0 : i64, tpu.core_type = #tpu.core_type<tc>, window_params = [{transform_indices = @transform_0, window_bounds = array<i64: 16, 256>}, {transform_indices = @transform_1, window_bounds = array<i64: 16, 256>}, {pipeline_mode = #tpu.pipeline_mode<synchronous>, transform_indices = @transform_2, window_bounds = array<i64: 256, 256>}, {pipeline_mode = #tpu.pipeline_mode<synchronous>, transform_indices = @transform_3, window_bounds = array<i64: 1, 256>}, {pipeline_mode = #tpu.pipeline_mode<synchronous>, transform_indices = @transform_4, window_bounds = array<i64: 256, 256>}, {pipeline_mode = #tpu.pipeline_mode<synchronous>, transform_indices = @transform_5, window_bounds = array<i64: 1, 256>}, {pipeline_mode = #tpu.pipeline_mode<synchronous>, transform_indices = @transform_6, window_bounds = array<i64: 256, 8>}, {pipeline_mode = #tpu.pipeline_mode<synchronous>, transform_indices = @transform_7, window_bounds = array<i64: 1, 8>}, {transform_indices = @transform_8, window_bounds = array<i64: 16, 8>}]} {
    %c0 = arith.constant 0 : index
    %c0_0 = arith.constant 0 : index
    %0 = vector.load %arg1[%c0, %c0_0] : memref<16x256xf32, #tpu.memory_space<vmem>>, vector<16x256xf32>
    %c0_1 = arith.constant 0 : index
    %c0_2 = arith.constant 0 : index
    %1 = vector.load %arg2[%c0_1, %c0_2] : memref<16x256xf32, #tpu.memory_space<vmem>>, vector<16x256xf32>
    %2 = arith.mulf %0, %1 : vector<16x256xf32>
    %3 = arith.truncf %2 : vector<16x256xf32> to vector<16x256xbf16>
    %c0_3 = arith.constant 0 : index
    %c0_4 = arith.constant 0 : index
    %4 = vector.load %arg3[%c0_3, %c0_4] : memref<256x256xbf16, #tpu.memory_space<vmem>>, vector<256x256xbf16>
    %c0_5 = arith.constant 0 : index
    %c0_6 = arith.constant 0 : index
    %5 = vector.load %arg4[%c0_5, %c0_6] : memref<1x256xf32, #tpu.memory_space<vmem>>, vector<1x256xf32>
    %cst = arith.constant dense<0.000000e+00> : vector<16x256xf32>
    %6 = tpu.matmul %3, %4, %cst {dimension_numbers = #tpu.dot_dimension_numbers<[1], [0], [0], [1], [0, 0, 1, 1], [], []>} : vector<16x256xbf16>, vector<256x256xbf16>, vector<16x256xf32> -> vector<16x256xf32>
    %7 = vector.broadcast %5 : vector<1x256xf32> to vector<16x256xf32>
    %8 = arith.addf %6, %7 : vector<16x256xf32>
    %cst_7 = arith.constant 0.000000e+00 : f32
    %9 = vector.broadcast %cst_7 : f32 to vector<16x256xf32>
    %10 = arith.maximumf %8, %9 : vector<16x256xf32>
    %11 = arith.truncf %10 : vector<16x256xf32> to vector<16x256xbf16>
    %c0_8 = arith.constant 0 : index
    %c0_9 = arith.constant 0 : index
    %12 = vector.load %arg5[%c0_8, %c0_9] : memref<256x256xbf16, #tpu.memory_space<vmem>>, vector<256x256xbf16>
    %c0_10 = arith.constant 0 : index
    %c0_11 = arith.constant 0 : index
    %13 = vector.load %arg6[%c0_10, %c0_11] : memref<1x256xf32, #tpu.memory_space<vmem>>, vector<1x256xf32>
    %cst_12 = arith.constant dense<0.000000e+00> : vector<16x256xf32>
    %14 = tpu.matmul %11, %12, %cst_12 {dimension_numbers = #tpu.dot_dimension_numbers<[1], [0], [0], [1], [0, 0, 1, 1], [], []>} : vector<16x256xbf16>, vector<256x256xbf16>, vector<16x256xf32> -> vector<16x256xf32>
    %15 = vector.broadcast %13 : vector<1x256xf32> to vector<16x256xf32>
    %16 = arith.addf %14, %15 : vector<16x256xf32>
    %cst_13 = arith.constant 0.000000e+00 : f32
    %17 = vector.broadcast %cst_13 : f32 to vector<16x256xf32>
    %18 = arith.maximumf %16, %17 : vector<16x256xf32>
    %19 = arith.truncf %18 : vector<16x256xf32> to vector<16x256xbf16>
    %c0_14 = arith.constant 0 : index
    %c0_15 = arith.constant 0 : index
    %20 = vector.load %arg7[%c0_14, %c0_15] : memref<256x8xbf16, #tpu.memory_space<vmem>>, vector<256x8xbf16>
    %c0_16 = arith.constant 0 : index
    %c0_17 = arith.constant 0 : index
    %21 = vector.load %arg8[%c0_16, %c0_17] : memref<1x8xf32, #tpu.memory_space<vmem>>, vector<1x8xf32>
    %cst_18 = arith.constant dense<0.000000e+00> : vector<16x8xf32>
    %22 = tpu.matmul %19, %20, %cst_18 {dimension_numbers = #tpu.dot_dimension_numbers<[1], [0], [0], [1], [0, 0, 1, 1], [], []>} : vector<16x256xbf16>, vector<256x8xbf16>, vector<16x8xf32> -> vector<16x8xf32>
    %23 = vector.broadcast %21 : vector<1x8xf32> to vector<16x8xf32>
    %24 = arith.addf %22, %23 : vector<16x8xf32>
    %25 = arith.negf %24 : vector<16x8xf32>
    %26 = math.exp %25 : vector<16x8xf32>
    %cst_19 = arith.constant 1.000000e+00 : f32
    %27 = vector.broadcast %cst_19 : f32 to vector<16x8xf32>
    %28 = arith.addf %27, %26 : vector<16x8xf32>
    %29 = arith.divf %27, %28 : vector<16x8xf32>
    %c0_20 = arith.constant 0 : index
    %c0_21 = arith.constant 0 : index
    %30 = vector.load %arg9[%c0_20, %c0_21] : memref<16x8xf32, #tpu.memory_space<vmem>>, vector<16x8xf32>
    tpu.vector_store %arg9[%c0_20, %c0_21], %29 {strides = array<i32>} : memref<16x8xf32, #tpu.memory_space<vmem>>, vector<16x8xf32>,
    return
  }
  func.func @transform_0(%arg0: i32) -> (i32, i32) {
    %c0_i32 = arith.constant 0 : i32
    %c0_i32_0 = arith.constant 0 : i32
    return %arg0, %c0_i32 : i32, i32
  }
  func.func @transform_1(%arg0: i32) -> (i32, i32) {
    %c0_i32 = arith.constant 0 : i32
    %c0_i32_0 = arith.constant 0 : i32
    return %arg0, %c0_i32 : i32, i32
  }
  func.func @transform_2(%arg0: i32) -> (i32, i32) {
    %c0_i32 = arith.constant 0 : i32
    %c0_i32_0 = arith.constant 0 : i32
    %c0_i32_1 = arith.constant 0 : i32
    return %c0_i32, %c0_i32_0 : i32, i32
  }
  func.func @transform_3(%arg0: i32) -> (i32, i32) {
    %c0_i32 = arith.constant 0 : i32
    %c0_i32_0 = arith.constant 0 : i32
    %c0_i32_1 = arith.constant 0 : i32
    return %c0_i32, %c0_i32_0 : i32, i32
  }
  func.func @transform_4(%arg0: i32) -> (i32, i32) {
    %c0_i32 = arith.constant 0 : i32
    %c0_i32_0 = arith.constant 0 : i32
    %c0_i32_1 = arith.constant 0 : i32
    return %c0_i32, %c0_i32_0 : i32, i32
  }
  func.func @transform_5(%arg0: i32) -> (i32, i32) {
    %c0_i32 = arith.constant 0 : i32
    %c0_i32_0 = arith.constant 0 : i32
    %c0_i32_1 = arith.constant 0 : i32
    return %c0_i32, %c0_i32_0 : i32, i32
  }
  func.func @transform_6(%arg0: i32) -> (i32, i32) {
    %c0_i32 = arith.constant 0 : i32
    %c0_i32_0 = arith.constant 0 : i32
    %c0_i32_1 = arith.constant 0 : i32
    return %c0_i32, %c0_i32_0 : i32, i32
  }
  func.func @transform_7(%arg0: i32) -> (i32, i32) {
    %c0_i32 = arith.constant 0 : i32
    %c0_i32_0 = arith.constant 0 : i32
    %c0_i32_1 = arith.constant 0 : i32
    return %c0_i32, %c0_i32_0 : i32, i32
  }
  func.func @transform_8(%arg0: i32) -> (i32, i32) {
    %c0_i32 = arith.constant 0 : i32
    %c0_i32_0 = arith.constant 0 : i32
    return %arg0, %c0_i32 : i32, i32
  }
}

</mosaic_0001>

<llo_original>
// kernel: tpu_custom_call.1
$region0: #{tpu_custom_call.1}
  #allocation0 [shape = 'u32[]', space=smem, size = 0x4, offset = 0x4, fixed_abs, tag = 'smem constant byte address 0x4 - core index']
  #allocation1 [shape = 'u32[144,128]{1,0:T(1,128)}', space=vmem, size = 0x12000, scoped, tag = 'internal scratch']
  %s0 = inlined_call_operand.hbm [shape: f32[128,256], index: 0, kind: input, shape index: {}]
  %s1 = inlined_call_operand.hbm [shape: f32[128,256], index: 1, kind: input, shape index: {}]
  %s2 = inlined_call_operand.hbm [shape: bf16[256,256], index: 2, kind: input, shape index: {}]
  %s3 = inlined_call_operand.vmem [shape: f32[1,256], index: 3, kind: input, shape index: {}]
  %s4 = inlined_call_operand.hbm [shape: bf16[256,256], index: 4, kind: input, shape index: {}]
  %s5 = inlined_call_operand.vmem [shape: f32[1,256], index: 5, kind: input, shape index: {}]
  %s6 = inlined_call_operand.vmem [shape: bf16[256,8], index: 6, kind: input, shape index: {}]
  %s7 = inlined_call_operand.vmem [shape: f32[1,8], index: 7, kind: input, shape index: {}]
  %s8 = inlined_call_operand.vmem [shape: f32[128,8], index: 8, kind: output, shape index: {}]
  %s9 = sld [smem:[#allocation0]]
  $region81: #{tpu_custom_call.1} parent=0
    _
  %s11 = ssub.s32 1, %s9
  %s12 = scalar_select 0, %s11, %s9
  $region1: #{tpu_custom_call.1} parent=0
    #allocation2 [shape = 'u8[32768]{0}', space=vmem, size = 0x8000, scoped, tag = 'input window, operand 0']
    #allocation3 [shape = 's32[2]{0}', space=sflag, size = 0x8, scoped, tag = 'scoped memory for tpu_custom_call.1']
    #allocation4 [shape = 'u8[32768]{0}', space=vmem, size = 0x8000, scoped, tag = 'input window, operand 1']
    #allocation5 [shape = 's32[2]{0}', space=sflag, size = 0x8, scoped, tag = 'scoped memory for tpu_custom_call.1']
    #allocation6 [shape = 'u8[131072]{0}', space=vmem, size = 0x20000, scoped, tag = 'input window, operand 2, single buffered']
    #allocation7 [shape = 'u8[131072]{0}', space=vmem, size = 0x20000, scoped, tag = 'input window, operand 4, single buffered']
    #allocation8 [shape = 's32[1]{0}', space=sflag, size = 0x4, scoped, tag = 'scoped memory for tpu_custom_call.1']
    %13 = vsyncpa [#allocation3], 0
    %s14 = scalar_lea.sflag [#allocation3], 1
    %15 = vsyncpa %s14, 0
    %16 = vsyncpa [#allocation5], 0
    %s17 = scalar_lea.sflag [#allocation5], 1
    %18 = vsyncpa %s17, 0
    %19 = vsyncpa [#allocation8], 0
    loop: start=0, step=1, limit=10
    $region2: #{tpu_custom_call.1} parent=1 // loop_pre_header
      _
    $region3: #{tpu_custom_call.1} parent=1 // loop_header
      %s21 = sphi 0, %s25
      %p22 = scmp.ge.s32.totalorder %s21, 10
      %s31 = sphi 0, %s33
      %s34 = sphi 0, %s31
      %s35 = sphi 0, %s34
      %s51 = sphi 0, %s35
      %s57 = sphi 0, %s59
      %s60 = sphi 0, %s57
      %s61 = sphi 0, %s60
      %s77 = sphi 0, %s61
      %s81 = sphi 0, %s81
      %s83 = sphi 0, %s81
      %s84 = sphi 0, %s83
      %s98 = sphi 0, %s84
      %s102 = sphi 0, %s102
      %s104 = sphi 0, %s102
      %s105 = sphi 0, %s104
      %s119 = sphi 0, %s105
      %s123 = sphi 0, %s123
      %s125 = sphi 0, %s123
      %s126 = sphi 0, %s125
      %s140 = sphi 0, %s126
      %s144 = sphi 0, %s144
      %s146 = sphi 0, %s144
      %s147 = sphi 0, %s146
      %s161 = sphi 0, %s147
      %s165 = sphi 0, %s165
      %s167 = sphi 0, %s165
      %s168 = sphi 0, %s167
      %s182 = sphi 0, %s168
      %s186 = sphi 0, %s186
      %s188 = sphi 0, %s186
      %s189 = sphi 0, %s188
      %s203 = sphi 0, %s189
      %s209 = sphi 0, %s211
      %s212 = sphi 0, %s209
      %s213 = sphi 0, %s212
      %s229 = sphi 0, %s213
    $region4: #{tpu_custom_call.1} parent=1 // loop_header_branch
      %24 = sbr.rel (%p22) target = $region8
    $region5: #{tpu_custom_call.1} parent=1 // loop_body
      %s26 = ssub.s32 %s21, 1
      %s27 = ssub.s32 %s21, 2
      %s28 = sadd.s32 %s21, 1
      %s29 = ssub.s32 %s21, %s28
      %p30 = scmp.eq.s32.totalorder %s29, 0
      %s32 = sadd.s32 %s31, 1
      %s33 = scalar_select %p30, %s31, %s32
      %p36 = pneg %p30
      %p37 = scmp.eq.s32.totalorder %s21, 7
      %p38 = por %p36, %p37
      %p39 = scmp.ne.s32.totalorder %s31, %s34
      %p40 = scmp.eq.s32.totalorder %s21, 0
      %p41 = por %p39, %p40
      %p42 = scmp.ne.s32.totalorder %s31, %s34
      %p43 = scmp.eq.s32.totalorder %s26, 7
      %p44 = por %p42, %p43
      %p45 = scmp.ne.s32.totalorder %s34, %s35
      %p46 = scmp.eq.s32.totalorder %s26, 0
      %p47 = por %p45, %p46
      %p48 = scmp.ne.s32.totalorder %s34, %s35
      %p49 = scmp.eq.s32.totalorder %s27, 7
      %p50 = por %p48, %p49
      %p52 = scmp.ne.s32.totalorder %s35, %s51
      %p53 = scmp.eq.s32.totalorder %s27, 0
      %p54 = por %p52, %p53
      %s55 = ssub.s32 %s21, %s28
      %p56 = scmp.eq.s32.totalorder %s55, 0
      %s58 = sadd.s32 %s57, 1
      %s59 = scalar_select %p56, %s57, %s58
      %p62 = pneg %p56
      %p63 = scmp.eq.s32.totalorder %s21, 7
      %p64 = por %p62, %p63
      %p65 = scmp.ne.s32.totalorder %s57, %s60
      %p66 = scmp.eq.s32.totalorder %s21, 0
      %p67 = por %p65, %p66
      %p68 = scmp.ne.s32.totalorder %s57, %s60
      %p69 = scmp.eq.s32.totalorder %s26, 7
      %p70 = por %p68, %p69
      %p71 = scmp.ne.s32.totalorder %s60, %s61
      %p72 = scmp.eq.s32.totalorder %s26, 0
      %p73 = por %p71, %p72
      %p74 = scmp.ne.s32.totalorder %s60, %s61
      %p75 = scmp.eq.s32.totalorder %s27, 7
      %p76 = por %p74, %p75
      %p78 = scmp.ne.s32.totalorder %s61, %s77
      %p79 = scmp.eq.s32.totalorder %s27, 0
      %p80 = por %p78, %p79
      %s82 = sadd.s32 %s81, 1
      %p85 = scmp.eq.s32.totalorder %s21, 7
      %p86 = scmp.ne.s32.totalorder %s81, %s83
      %p87 = scmp.eq.s32.totalorder %s21, 0
      %p88 = por %p86, %p87
      %p89 = scmp.ne.s32.totalorder %s81, %s83
      %p90 = scmp.eq.s32.totalorder %s26, 7
      %p91 = por %p89, %p90
      %p92 = scmp.ne.s32.totalorder %s83, %s84
      %p93 = scmp.eq.s32.totalorder %s26, 0
      %p94 = por %p92, %p93
      %p95 = scmp.ne.s32.totalorder %s83, %s84
      %p96 = scmp.eq.s32.totalorder %s27, 7
      %p97 = por %p95, %p96
      %p99 = scmp.ne.s32.totalorder %s84, %s98
      %p100 = scmp.eq.s32.totalorder %s27, 0
      %p101 = por %p99, %p100
      %s103 = sadd.s32 %s102, 1
      %p106 = scmp.eq.s32.totalorder %s21, 7
      %p107 = scmp.ne.s32.totalorder %s102, %s104
      %p108 = scmp.eq.s32.totalorder %s21, 0
      %p109 = por %p107, %p108
      %p110 = scmp.ne.s32.totalorder %s102, %s104
      %p111 = scmp.eq.s32.totalorder %s26, 7
      %p112 = por %p110, %p111
      %p113 = scmp.ne.s32.totalorder %s104, %s105
      %p114 = scmp.eq.s32.totalorder %s26, 0
      %p115 = por %p113, %p114
      %p116 = scmp.ne.s32.totalorder %s104, %s105
      %p117 = scmp.eq.s32.totalorder %s27, 7
      %p118 = por %p116, %p117
      %p120 = scmp.ne.s32.totalorder %s105, %s119
      %p121 = scmp.eq.s32.totalorder %s27, 0
      %p122 = por %p120, %p121
      %s124 = sadd.s32 %s123, 1
      %p127 = scmp.eq.s32.totalorder %s21, 7
      %p128 = scmp.ne.s32.totalorder %s123, %s125
      %p129 = scmp.eq.s32.totalorder %s21, 0
      %p130 = por %p128, %p129
      %p131 = scmp.ne.s32.totalorder %s123, %s125
      %p132 = scmp.eq.s32.totalorder %s26, 7
      %p133 = por %p131, %p132
      %p134 = scmp.ne.s32.totalorder %s125, %s126
      %p135 = scmp.eq.s32.totalorder %s26, 0
      %p136 = por %p134, %p135
      %p137 = scmp.ne.s32.totalorder %s125, %s126
      %p138 = scmp.eq.s32.totalorder %s27, 7
      %p139 = por %p137, %p138
      %p141 = scmp.ne.s32.totalorder %s126, %s140
      %p142 = scmp.eq.s32.totalorder %s27, 0
      %p143 = por %p141, %p142
      %s145 = sadd.s32 %s144, 1
      %p148 = scmp.eq.s32.totalorder %s21, 7
      %p149 = scmp.ne.s32.totalorder %s144, %s146
      %p150 = scmp.eq.s32.totalorder %s21, 0
      %p151 = por %p149, %p150
      %p152 = scmp.ne.s32.totalorder %s144, %s146
      %p153 = scmp.eq.s32.totalorder %s26, 7
      %p154 = por %p152, %p153
      %p155 = scmp.ne.s32.totalorder %s146, %s147
      %p156 = scmp.eq.s32.totalorder %s26, 0
      %p157 = por %p155, %p156
      %p158 = scmp.ne.s32.totalorder %s146, %s147
      %p159 = scmp.eq.s32.totalorder %s27, 7
      %p160 = por %p158, %p159
      %p162 = scmp.ne.s32.totalorder %s147, %s161
      %p163 = scmp.eq.s32.totalorder %s27, 0
      %p164 = por %p162, %p163
      %s166 = sadd.s32 %s165, 1
      %p169 = scmp.eq.s32.totalorder %s21, 7
      %p170 = scmp.ne.s32.totalorder %s165, %s167
      %p171 = scmp.eq.s32.totalorder %s21, 0
      %p172 = por %p170, %p171
      %p173 = scmp.ne.s32.totalorder %s165, %s167
      %p174 = scmp.eq.s32.totalorder %s26, 7
      %p175 = por %p173, %p174
      %p176 = scmp.ne.s32.totalorder %s167, %s168
      %p177 = scmp.eq.s32.totalorder %s26, 0
      %p178 = por %p176, %p177
      %p179 = scmp.ne.s32.totalorder %s167, %s168
      %p180 = scmp.eq.s32.totalorder %s27, 7
      %p181 = por %p179, %p180
      %p183 = scmp.ne.s32.totalorder %s168, %s182
      %p184 = scmp.eq.s32.totalorder %s27, 0
      %p185 = por %p183, %p184
      %s187 = sadd.s32 %s186, 1
      %p190 = scmp.eq.s32.totalorder %s21, 7
      %p191 = scmp.ne.s32.totalorder %s186, %s188
      %p192 = scmp.eq.s32.totalorder %s21, 0
      %p193 = por %p191, %p192
      %p194 = scmp.ne.s32.totalorder %s186, %s188
      %p195 = scmp.eq.s32.totalorder %s26, 7
      %p196 = por %p194, %p195
      %p197 = scmp.ne.s32.totalorder %s188, %s189
      %p198 = scmp.eq.s32.totalorder %s26, 0
      %p199 = por %p197, %p198
      %p200 = scmp.ne.s32.totalorder %s188, %s189
      %p201 = scmp.eq.s32.totalorder %s27, 7
      %p202 = por %p200, %p201
      %p204 = scmp.ne.s32.totalorder %s189, %s203
      %p205 = scmp.eq.s32.totalorder %s27, 0
      %p206 = por %p204, %p205
      %s207 = ssub.s32 %s21, %s28
      %p208 = scmp.eq.s32.totalorder %s207, 0
      %s210 = sadd.s32 %s209, 1
      %s211 = scalar_select %p208, %s209, %s210
      %p214 = pneg %p208
      %p215 = scmp.eq.s32.totalorder %s21, 7
      %p216 = por %p214, %p215
      %p217 = scmp.ne.s32.totalorder %s209, %s212
      %p218 = scmp.eq.s32.totalorder %s21, 0
      %p219 = por %p217, %p218
      %p220 = scmp.ne.s32.totalorder %s209, %s212
      %p221 = scmp.eq.s32.totalorder %s26, 7
      %p222 = por %p220, %p221
      %p223 = scmp.ne.s32.totalorder %s212, %s213
      %p224 = scmp.eq.s32.totalorder %s26, 0
      %p225 = por %p223, %p224
      %p226 = scmp.ne.s32.totalorder %s212, %s213
      %p227 = scmp.eq.s32.totalorder %s27, 7
      %p228 = por %p226, %p227
      %p230 = scmp.ne.s32.totalorder %s213, %s229
      %p231 = scmp.eq.s32.totalorder %s27, 0
      %p232 = por %p230, %p231
      %p233 = scmp.le.s32.totalorder 1, %s21
      %p234 = scmp.lt.s32.totalorder %s21, 9
      %p235 = pnand %p233, %p234
      %p236 = pneg %p235
      // Predicated region
      $region9: #{tpu_custom_call.1} parent=5 // pred_check
        _
      $region10: #{tpu_custom_call.1} parent=5 // pred_check_branch
        %238 = sbr.rel (%p235) target = $region12
      $region11: #{tpu_custom_call.1} parent=5 // pred_region
        %s239 = ssub.s32 %s21, 1
        // Predicated region
        $region13: #{tpu_custom_call.1} parent=11 // pred_check
          %p240 = pneg %p94
        $region14: #{tpu_custom_call.1} parent=11 // pred_check_branch
          %242 = sbr.rel (%p240) target = $region16
        $region15: #{tpu_custom_call.1} parent=11 // pred_region
          %s244 = ssub.s32 4096, 4096
          %245 = vsyncadd [#allocation5], %s244
          %s246 = sshll.u32 [#allocation6], 4
          %s247 = int_to_ptr.vmem [resolvable:$true] %s246
          %252 = dma.hbm_to_vmem [thread:$0]  %s2, 4096, %s247, [#allocation5], 128, 128, 8
        $region16: #{tpu_custom_call.1} parent=11 // pred_fallthru
          _
        // Predicated region
        $region17: #{tpu_custom_call.1} parent=11 // pred_check
          %p253 = pneg %p115
        $region18: #{tpu_custom_call.1} parent=11 // pred_check_branch
          %255 = sbr.rel (%p253) target = $region20
        $region19: #{tpu_custom_call.1} parent=11 // pred_region
          _
        $region20: #{tpu_custom_call.1} parent=11 // pred_fallthru
          _
        // Predicated region
        $region21: #{tpu_custom_call.1} parent=11 // pred_check
          %p256 = pneg %p136
        $region22: #{tpu_custom_call.1} parent=11 // pred_check_branch
          %258 = sbr.rel (%p256) target = $region24
        $region23: #{tpu_custom_call.1} parent=11 // pred_region
          %s260 = ssub.s32 4096, 4096
          %261 = vsyncadd [#allocation8], %s260
          %s262 = sshll.u32 [#allocation7], 4
          %s263 = int_to_ptr.vmem [resolvable:$true] %s262
          %268 = dma.hbm_to_vmem [thread:$0]  %s4, 4096, %s263, [#allocation8], 128, 128, 8
        $region24: #{tpu_custom_call.1} parent=11 // pred_fallthru
          _
        // Predicated region
        $region25: #{tpu_custom_call.1} parent=11 // pred_check
          %p269 = pneg %p157
        $region26: #{tpu_custom_call.1} parent=11 // pred_check_branch
          %271 = sbr.rel (%p269) target = $region28
        $region27: #{tpu_custom_call.1} parent=11 // pred_region
          _
        $region28: #{tpu_custom_call.1} parent=11 // pred_fallthru
          _
        // Predicated region
        $region29: #{tpu_custom_call.1} parent=11 // pred_check
          %p272 = pneg %p178
        $region30: #{tpu_custom_call.1} parent=11 // pred_check_branch
          %274 = sbr.rel (%p272) target = $region32
        $region31: #{tpu_custom_call.1} parent=11 // pred_region
          _
        $region32: #{tpu_custom_call.1} parent=11 // pred_fallthru
          _
        // Predicated region
        $region33: #{tpu_custom_call.1} parent=11 // pred_check
          %p275 = pneg %p199
        $region34: #{tpu_custom_call.1} parent=11 // pred_check_branch
          %277 = sbr.rel (%p275) target = $region36
        $region35: #{tpu_custom_call.1} parent=11 // pred_region
          _
        $region36: #{tpu_custom_call.1} parent=11 // pred_fallthru
          _
      $region12: #{tpu_custom_call.1} parent=5 // pred_fallthru
        _
      %p278 = scmp.lt.s32.totalorder %s21, 8
      // Predicated region
      $region37: #{tpu_custom_call.1} parent=5 // pred_check
        %p279 = pneg %p278
      $region38: #{tpu_custom_call.1} parent=5 // pred_check_branch
        %281 = sbr.rel (%p279) target = $region40
      $region39: #{tpu_custom_call.1} parent=5 // pred_region
        // Predicated region
        $region41: #{tpu_custom_call.1} parent=39 // pred_check
          %p282 = pneg %p41
        $region42: #{tpu_custom_call.1} parent=39 // pred_check_branch
          %284 = sbr.rel (%p282) target = $region44
        $region43: #{tpu_custom_call.1} parent=39 // pred_region
          %s285 = sand.u32 %s31, 1
          %s286 = scalar_lea.sflag [#allocation3], %s285
          %s287 = sand.u32 %s31, 1
          %s288 = smul.addr %s287, 32
          %s289 = scalar_lea.vmem [#allocation2], %s288
          %s290 = smul.u32 2, %s21
          %s292 = ssub.s32 512, 512
          %293 = vsyncadd %s286, %s292
          %s294 = smul.addr %s290, 2
          %s295 = smul.addr %s294, 128
          %s296 = scalar_lea.hbm %s0, %s295
          %s297 = sshll.u32 %s289, 4
          %s298 = int_to_ptr.vmem [resolvable:$true] %s297
          %303 = dma.hbm_to_vmem [thread:$0]  %s296, 512, %s298, %s286, 256, 256, 16
        $region44: #{tpu_custom_call.1} parent=39 // pred_fallthru
          _
        // Predicated region
        $region45: #{tpu_custom_call.1} parent=39 // pred_check
          %p304 = pneg %p67
        $region46: #{tpu_custom_call.1} parent=39 // pred_check_branch
          %306 = sbr.rel (%p304) target = $region48
        $region47: #{tpu_custom_call.1} parent=39 // pred_region
          %s307 = sand.u32 %s21, 1
          %s308 = scalar_lea.sflag [#allocation5], %s307
          %s309 = sand.u32 %s57, 1
          %s310 = smul.addr %s309, 32
          %s311 = scalar_lea.vmem [#allocation4], %s310
          %s312 = smul.u32 2, %s21
          %s314 = ssub.s32 512, 512
          %315 = vsyncadd %s308, %s314
          %s316 = smul.addr %s312, 2
          %s317 = smul.addr %s316, 128
          %s318 = scalar_lea.hbm %s1, %s317
          %s319 = sshll.u32 %s311, 4
          %s320 = int_to_ptr.vmem [resolvable:$true] %s319
          %325 = dma.hbm_to_vmem [thread:$0]  %s318, 512, %s320, %s308, 256, 256, 16
        $region48: #{tpu_custom_call.1} parent=39 // pred_fallthru
          _
      $region40: #{tpu_custom_call.1} parent=5 // pred_fallthru
        _
      %p326 = scmp.le.s32.totalorder 1, %s21
      %p327 = scmp.lt.s32.totalorder %s21, 9
      %p328 = pnand %p326, %p327
      %p329 = pneg %p328
      // Predicated region
      $region49: #{tpu_custom_call.1} parent=5 // pred_check
        _
      $region50: #{tpu_custom_call.1} parent=5 // pred_check_branch
        %331 = sbr.rel (%p328) target = $region52
      $region51: #{tpu_custom_call.1} parent=5 // pred_region
        %s332 = ssub.s32 %s21, 1
        %s333 = sand.u32 %s34, 1
        %s334 = scalar_lea.sflag [#allocation3], %s333
        %s335 = sand.u32 %s34, 1
        %s336 = smul.addr %s335, 32
        %s337 = scalar_lea.vmem [#allocation2], %s336
        // Predicated region
        $region53: #{tpu_custom_call.1} parent=51 // pred_check
          %p338 = pneg %p47
        $region54: #{tpu_custom_call.1} parent=51 // pred_check_branch
          %340 = sbr.rel (%p338) target = $region56
        $region55: #{tpu_custom_call.1} parent=51 // pred_region
          %341 = dma.done %s334, 512
        $region56: #{tpu_custom_call.1} parent=51 // pred_fallthru
          _
        %s342 = sand.u32 %s26, 1
        %s343 = scalar_lea.sflag [#allocation5], %s342
        %s344 = sand.u32 %s60, 1
        %s345 = smul.addr %s344, 32
        %s346 = scalar_lea.vmem [#allocation4], %s345
        // Predicated region
        $region57: #{tpu_custom_call.1} parent=51 // pred_check
          %p347 = pneg %p73
        $region58: #{tpu_custom_call.1} parent=51 // pred_check_branch
          %349 = sbr.rel (%p347) target = $region60
        $region59: #{tpu_custom_call.1} parent=51 // pred_region
          %350 = dma.done %s343, 512
        $region60: #{tpu_custom_call.1} parent=51 // pred_fallthru
          _
        // Predicated region
        $region61: #{tpu_custom_call.1} parent=51 // pred_check
          %p351 = pneg %p94
        $region62: #{tpu_custom_call.1} parent=51 // pred_check_branch
          %353 = sbr.rel (%p351) target = $region64
        $region63: #{tpu_custom_call.1} parent=51 // pred_region
          %354 = dma.done [#allocation5], 4096
        $region64: #{tpu_custom_call.1} parent=51 // pred_fallthru
          _
        // Predicated region
        $region65: #{tpu_custom_call.1} parent=51 // pred_check
          %p355 = pneg %p136
        $region66: #{tpu_custom_call.1} parent=51 // pred_check_branch
          %357 = sbr.rel (%p355) target = $region68
        $region67: #{tpu_custom_call.1} parent=51 // pred_region
          %358 = dma.done [#allocation8], 4096
        $region68: #{tpu_custom_call.1} parent=51 // pred_fallthru
          _
        %s359 = sand.u32 %s34, 1
        %s360 = scalar_lea.sflag [#allocation3], %s359
        %s361 = sand.u32 %s34, 1
        %s362 = smul.addr %s361, 32
        %s363 = scalar_lea.vmem [#allocation2], %s362
        %p364 = pneg %p47
        %p365 = pneg %p44
        %s366 = sand.u32 %s26, 1
        %s367 = scalar_lea.sflag [#allocation5], %s366
        %s368 = sand.u32 %s60, 1
        %s369 = smul.addr %s368, 32
        %s370 = scalar_lea.vmem [#allocation4], %s369
        %p371 = pneg %p73
        %p372 = pneg %p70
        %p373 = pneg %p94
        %p374 = pneg %p91
        %p375 = pneg %p115
        %p376 = pneg %p112
        %p377 = pneg %p136
        %p378 = pneg %p133
        %p379 = pneg %p157
        %p380 = pneg %p154
        %p381 = pneg %p178
        %p382 = pneg %p175
        %p383 = pneg %p199
        %p384 = pneg %p196
        %p385 = pneg %p225
        %p386 = pneg %p222
        %s387 = smul.u32 2, %s26
        %p388 = scmp.lt.s32.totalorder %s387, 15
        %s389 = scalar_select %p388, %s387, 15
        %s390 = smul.addr %s389, 8
        %s391 = scalar_lea.vmem %s8, %s390
        %s392 = smul.u32 2, %s26
        %s393 = smul.u32 2, %s26
        %s394 = smul.u32 2, %s26
        %p395 = scmp.lt.s32.totalorder %s394, 15
        %s396 = scalar_select %p395, %s394, 15
        %s397 = smul.addr %s396, 8
        %s398 = scalar_lea.vmem %s8, %s397
        %s399 = smul.u32 2, %s26
        %v401 = vld [vmem:[%s337] sm:$0xff]
        %v402 = vld [vmem:[%s337 + $0x8] sm:$0xff]
        %v403 = vld [vmem:[%s337 + $0x10] sm:$0xff]
        %v404 = vld [vmem:[%s337 + $0x18] sm:$0xff]
        %v405 = vld [vmem:[%s346] sm:$0xff]
        %v406 = vld [vmem:[%s346 + $0x8] sm:$0xff]
        %v407 = vld [vmem:[%s346 + $0x10] sm:$0xff]
        %v408 = vld [vmem:[%s346 + $0x18] sm:$0xff]
        %v409 = vmul.f32 %v401, %v405
        %v410 = vmul.f32 %v402, %v406
        %v411 = vmul.f32 %v403, %v407
        %v412 = vmul.f32 %v404, %v408
        %v413 = vpack.c.bf16 %v411, %v409
        %v414 = vpack.c.bf16 %v412, %v410
        %v415 = vld [vmem:[#allocation6] sm:$0xff]
        %v416 = vld [vmem:[#allocation6 + $0x8] sm:$0xff]
        %v417 = vld [vmem:[#allocation6 + $0x10] sm:$0xff]
        %v418 = vld [vmem:[#allocation6 + $0x18] sm:$0xff]
        %v419 = vld [vmem:[#allocation6 + $0x20] sm:$0xff]
        %v420 = vld [vmem:[#allocation6 + $0x28] sm:$0xff]
        %v421 = vld [vmem:[#allocation6 + $0x30] sm:$0xff]
        %v422 = vld [vmem:[#allocation6 + $0x38] sm:$0xff]
        %v423 = vld [vmem:[#allocation6 + $0x40] sm:$0xff]
        %v424 = vld [vmem:[#allocation6 + $0x48] sm:$0xff]
        %v425 = vld [vmem:[#allocation6 + $0x50] sm:$0xff]
        %v426 = vld [vmem:[#allocation6 + $0x58] sm:$0xff]
        %v427 = vld [vmem:[#allocation6 + $0x60] sm:$0xff]
        %v428 = vld [vmem:[#allocation6 + $0x68] sm:$0xff]
        %v429 = vld [vmem:[#allocation6 + $0x70] sm:$0xff]
        %v430 = vld [vmem:[#allocation6 + $0x78] sm:$0xff]
        %v431 = vld [vmem:[#allocation6 + $0x80] sm:$0xff]
        %v432 = vld [vmem:[#allocation6 + $0x88] sm:$0xff]
        %v433 = vld [vmem:[#allocation6 + $0x90] sm:$0xff]
        %v434 = vld [vmem:[#allocation6 + $0x98] sm:$0xff]
        %v435 = vld [vmem:[#allocation6 + $0xa0] sm:$0xff]
        %v436 = vld [vmem:[#allocation6 + $0xa8] sm:$0xff]
        %v437 = vld [vmem:[#allocation6 + $0xb0] sm:$0xff]
        %v438 = vld [vmem:[#allocation6 + $0xb8] sm:$0xff]
        %v439 = vld [vmem:[#allocation6 + $0xc0] sm:$0xff]
        %v440 = vld [vmem:[#allocation6 + $0xc8] sm:$0xff]
        %v441 = vld [vmem:[#allocation6 + $0xd0] sm:$0xff]
        %v442 = vld [vmem:[#allocation6 + $0xd8] sm:$0xff]
        %v443 = vld [vmem:[#allocation6 + $0xe0] sm:$0xff]
        %v444 = vld [vmem:[#allocation6 + $0xe8] sm:$0xff]
        %v445 = vld [vmem:[#allocation6 + $0xf0] sm:$0xff]
        %v446 = vld [vmem:[#allocation6 + $0xf8] sm:$0xff]
        %v447 = vld [vmem:[%s3] sm:$0x3]
        %v449 = vlaneseq
        %v450 = vshrl.u32 %v449, 7
        %v451 = vsub.s32 0, %v450
        %v452 = vrot.slane %v447, %v451
        %v453 = vlaneseq
        %v454 = vshrl.u32 %v453, 7
        %v455 = vsub.s32 1, %v454
        %v456 = vrot.slane %v447, %v455
        %v491 = vunpack.c.l.b16 %v415
        %v492 = vunpack.c.h.b16 %v415
        %v493 = vunpack.c.l.b16 %v416
        %v494 = vunpack.c.h.b16 %v416
        %v495 = vunpack.c.l.b16 %v417
        %v496 = vunpack.c.h.b16 %v417
        %v497 = vunpack.c.l.b16 %v418
        %v498 = vunpack.c.h.b16 %v418
        %v499 = vunpack.c.l.b16 %v419
        %v500 = vunpack.c.h.b16 %v419
        %v501 = vunpack.c.l.b16 %v420
        %v502 = vunpack.c.h.b16 %v420
        %v503 = vunpack.c.l.b16 %v421
        %v504 = vunpack.c.h.b16 %v421
        %v505 = vunpack.c.l.b16 %v422
        %v506 = vunpack.c.h.b16 %v422
        %v507 = vunpack.c.l.b16 %v423
        %v508 = vunpack.c.h.b16 %v423
        %v509 = vunpack.c.l.b16 %v424
        %v510 = vunpack.c.h.b16 %v424
        %v511 = vunpack.c.l.b16 %v425
        %v512 = vunpack.c.h.b16 %v425
        %v513 = vunpack.c.l.b16 %v426
        %v514 = vunpack.c.h.b16 %v426
        %v515 = vunpack.c.l.b16 %v427
        %v516 = vunpack.c.h.b16 %v427
        %v517 = vunpack.c.l.b16 %v428
        %v518 = vunpack.c.h.b16 %v428
        %v519 = vunpack.c.l.b16 %v429
        %v520 = vunpack.c.h.b16 %v429
        %v521 = vunpack.c.l.b16 %v430
        %v522 = vunpack.c.h.b16 %v430
        %v523 = vunpack.c.l.b16 %v431
        %v524 = vunpack.c.h.b16 %v431
        %v525 = vunpack.c.l.b16 %v432
        %v526 = vunpack.c.h.b16 %v432
        %v527 = vunpack.c.l.b16 %v433
        %v528 = vunpack.c.h.b16 %v433
        %v529 = vunpack.c.l.b16 %v434
        %v530 = vunpack.c.h.b16 %v434
        %v531 = vunpack.c.l.b16 %v435
        %v532 = vunpack.c.h.b16 %v435
        %v533 = vunpack.c.l.b16 %v436
        %v534 = vunpack.c.h.b16 %v436
        %v535 = vunpack.c.l.b16 %v437
        %v536 = vunpack.c.h.b16 %v437
        %v537 = vunpack.c.l.b16 %v438
        %v538 = vunpack.c.h.b16 %v438
        %v539 = vunpack.c.l.b16 %v439
        %v540 = vunpack.c.h.b16 %v439
        %v541 = vunpack.c.l.b16 %v440
        %v542 = vunpack.c.h.b16 %v440
        %v543 = vunpack.c.l.b16 %v441
        %v544 = vunpack.c.h.b16 %v441
        %v545 = vunpack.c.l.b16 %v442
        %v546 = vunpack.c.h.b16 %v442
        %v547 = vunpack.c.l.b16 %v443
        %v548 = vunpack.c.h.b16 %v443
        %v549 = vunpack.c.l.b16 %v444
        %v550 = vunpack.c.h.b16 %v444
        %v551 = vunpack.c.l.b16 %v445
        %v552 = vunpack.c.h.b16 %v445
        %v553 = vunpack.c.l.b16 %v446
        %v554 = vunpack.c.h.b16 %v446
        %v555 = vpack.c.b16 %v493, %v491
        %v556 = vpack.c.b16 %v494, %v492
        %v557 = vpack.c.b16 %v497, %v495
        %v558 = vpack.c.b16 %v498, %v496
        %v559 = vpack.c.b16 %v501, %v499
        %v560 = vpack.c.b16 %v502, %v500
        %v561 = vpack.c.b16 %v505, %v503
        %v562 = vpack.c.b16 %v506, %v504
        %v563 = vpack.c.b16 %v509, %v507
        %v564 = vpack.c.b16 %v510, %v508
        %v565 = vpack.c.b16 %v513, %v511
        %v566 = vpack.c.b16 %v514, %v512
        %v567 = vpack.c.b16 %v517, %v515
        %v568 = vpack.c.b16 %v518, %v516
        %v569 = vpack.c.b16 %v521, %v519
        %v570 = vpack.c.b16 %v522, %v520
        %v571 = vpack.c.b16 %v525, %v523
        %v572 = vpack.c.b16 %v526, %v524
        %v573 = vpack.c.b16 %v529, %v527
        %v574 = vpack.c.b16 %v530, %v528
        %v575 = vpack.c.b16 %v533, %v531
        %v576 = vpack.c.b16 %v534, %v532
        %v577 = vpack.c.b16 %v537, %v535
        %v578 = vpack.c.b16 %v538, %v536
        %v579 = vpack.c.b16 %v541, %v539
        %v580 = vpack.c.b16 %v542, %v540
        %v581 = vpack.c.b16 %v545, %v543
        %v582 = vpack.c.b16 %v546, %v544
        %v583 = vpack.c.b16 %v549, %v547
        %v584 = vpack.c.b16 %v550, %v548
        %v585 = vpack.c.b16 %v553, %v551
        %v586 = vpack.c.b16 %v554, %v552
        %619 = vmatprep.subr.bf16.mxu0 %v556
        %620 = vmatpush1.bf16.msra.mxu0 %v555
        %621 = vmatprep.subr.bf16.mxu0 %v558
        %622 = vmatpush1.bf16.msra.mxu0 %v557
        %623 = vmatprep.subr.bf16.mxu0 %v560
        %624 = vmatpush1.bf16.msra.mxu0 %v559
        %625 = vmatprep.subr.bf16.mxu0 %v562
        %626 = vmatpush1.bf16.msra.mxu0 %v561
        %627 = vmatprep.subr.bf16.mxu0 %v564
        %628 = vmatpush1.bf16.msra.mxu0 %v563
        %629 = vmatprep.subr.bf16.mxu0 %v566
        %630 = vmatpush1.bf16.msra.mxu0 %v565
        %631 = vmatprep.subr.bf16.mxu0 %v568
        %632 = vmatpush1.bf16.msra.mxu0 %v567
        %633 = vmatprep.subr.bf16.mxu0 %v570
        %634 = vmatpush1.bf16.msra.mxu0 %v569
        %635 = vmatprep.subr.bf16.mxu0 %v572
        %636 = vmatpush1.bf16.msra.mxu0 %v571
        %637 = vmatprep.subr.bf16.mxu0 %v574
        %638 = vmatpush1.bf16.msra.mxu0 %v573
        %639 = vmatprep.subr.bf16.mxu0 %v576
        %640 = vmatpush1.bf16.msra.mxu0 %v575
        %641 = vmatprep.subr.bf16.mxu0 %v578
        %642 = vmatpush1.bf16.msra.mxu0 %v577
        %643 = vmatprep.subr.bf16.mxu0 %v580
        %644 = vmatpush1.bf16.msra.mxu0 %v579
        %645 = vmatprep.subr.bf16.mxu0 %v582
        %646 = vmatpush1.bf16.msra.mxu0 %v581
        %647 = vmatprep.subr.bf16.mxu0 %v584
        %648 = vmatpush1.bf16.msra.mxu0 %v583
        %649 = vmatprep.subr.bf16.mxu0 %v586
        %650 = vmatpush1.bf16.msra.mxu0 %v585
        %651 = vmatprep.mubr.bf16.mxu0 %v414
        %652 = vmatmul.mubr.bf16.gmra.mrb[0].mxu0 %v413
        %v653 = vpop.f32.mrb[0].mxu0
        %v654 = vadd.f32 %v452, %v653
        %v655 = vpop.f32.mrb[0].mxu0
        %v656 = vadd.f32 %v456, %v655
        %v657 = vpop.f32.mrb[0].mxu0
        %v658 = vadd.f32 %v452, %v657
        %v659 = vpop.f32.mrb[0].mxu0
        %v660 = vadd.f32 %v456, %v659
        %661 = vdwg.mxu0
        %v662 = vmax.f32 %v654, 0.0
        %v663 = vmax.f32 %v656, 0.0
        %v664 = vmax.f32 %v658, 0.0
        %v665 = vmax.f32 %v660, 0.0
        %v666 = vpack.c.bf16 %v664, %v662
        %v667 = vpack.c.bf16 %v665, %v663
        %v668 = vld [vmem:[#allocation7] sm:$0xff]
        %v669 = vld [vmem:[#allocation7 + $0x8] sm:$0xff]
        %v670 = vld [vmem:[#allocation7 + $0x10] sm:$0xff]
        %v671 = vld [vmem:[#allocation7 + $0x18] sm:$0xff]
        %v672 = vld [vmem:[#allocation7 + $0x20] sm:$0xff]
        %v673 = vld [vmem:[#allocation7 + $0x28] sm:$0xff]
        %v674 = vld [vmem:[#allocation7 + $0x30] sm:$0xff]
        %v675 = vld [vmem:[#allocation7 + $0x38] sm:$0xff]
        %v676 = vld [vmem:[#allocation7 + $0x40] sm:$0xff]
        %v677 = vld [vmem:[#allocation7 + $0x48] sm:$0xff]
        %v678 = vld [vmem:[#allocation7 + $0x50] sm:$0xff]
        %v679 = vld [vmem:[#allocation7 + $0x58] sm:$0xff]
        %v680 = vld [vmem:[#allocation7 + $0x60] sm:$0xff]
        %v681 = vld [vmem:[#allocation7 + $0x68] sm:$0xff]
        %v682 = vld [vmem:[#allocation7 + $0x70] sm:$0xff]
        %v683 = vld [vmem:[#allocation7 + $0x78] sm:$0xff]
        %v684 = vld [vmem:[#allocation7 + $0x80] sm:$0xff]
        %v685 = vld [vmem:[#allocation7 + $0x88] sm:$0xff]
        %v686 = vld [vmem:[#allocation7 + $0x90] sm:$0xff]
        %v687 = vld [vmem:[#allocation7 + $0x98] sm:$0xff]
        %v688 = vld [vmem:[#allocation7 + $0xa0] sm:$0xff]
        %v689 = vld [vmem:[#allocation7 + $0xa8] sm:$0xff]
        %v690 = vld [vmem:[#allocation7 + $0xb0] sm:$0xff]
        %v691 = vld [vmem:[#allocation7 + $0xb8] sm:$0xff]
        %v692 = vld [vmem:[#allocation7 + $0xc0] sm:$0xff]
        %v693 = vld [vmem:[#allocation7 + $0xc8] sm:$0xff]
        %v694 = vld [vmem:[#allocation7 + $0xd0] sm:$0xff]
        %v695 = vld [vmem:[#allocation7 + $0xd8] sm:$0xff]
        %v696 = vld [vmem:[#allocation7 + $0xe0] sm:$0xff]
        %v697 = vld [vmem:[#allocation7 + $0xe8] sm:$0xff]
        %v698 = vld [vmem:[#allocation7 + $0xf0] sm:$0xff]
        %v699 = vld [vmem:[#allocation7 + $0xf8] sm:$0xff]
        %v700 = vld [vmem:[%s5] sm:$0x3]
        %v702 = vlaneseq
        %v703 = vshrl.u32 %v702, 7
        %v704 = vsub.s32 0, %v703
        %v705 = vrot.slane %v700, %v704
        %v706 = vlaneseq
        %v707 = vshrl.u32 %v706, 7
        %v708 = vsub.s32 1, %v707
        %v709 = vrot.slane %v700, %v708
        %v744 = vunpack.c.l.b16 %v668
        %v745 = vunpack.c.h.b16 %v668
        %v746 = vunpack.c.l.b16 %v669
        %v747 = vunpack.c.h.b16 %v669
        %v748 = vunpack.c.l.b16 %v670
        %v749 = vunpack.c.h.b16 %v670
        %v750 = vunpack.c.l.b16 %v671
        %v751 = vunpack.c.h.b16 %v671
        %v752 = vunpack.c.l.b16 %v672
        %v753 = vunpack.c.h.b16 %v672
        %v754 = vunpack.c.l.b16 %v673
        %v755 = vunpack.c.h.b16 %v673
        %v756 = vunpack.c.l.b16 %v674
        %v757 = vunpack.c.h.b16 %v674
        %v758 = vunpack.c.l.b16 %v675
        %v759 = vunpack.c.h.b16 %v675
        %v760 = vunpack.c.l.b16 %v676
        %v761 = vunpack.c.h.b16 %v676
        %v762 = vunpack.c.l.b16 %v677
        %v763 = vunpack.c.h.b16 %v677
        %v764 = vunpack.c.l.b16 %v678
        %v765 = vunpack.c.h.b16 %v678
        %v766 = vunpack.c.l.b16 %v679
        %v767 = vunpack.c.h.b16 %v679
        %v768 = vunpack.c.l.b16 %v680
        %v769 = vunpack.c.h.b16 %v680
        %v770 = vunpack.c.l.b16 %v681
        %v771 = vunpack.c.h.b16 %v681
        %v772 = vunpack.c.l.b16 %v682
        %v773 = vunpack.c.h.b16 %v682
        %v774 = vunpack.c.l.b16 %v683
        %v775 = vunpack.c.h.b16 %v683
        %v776 = vunpack.c.l.b16 %v684
        %v777 = vunpack.c.h.b16 %v684
        %v778 = vunpack.c.l.b16 %v685
        %v779 = vunpack.c.h.b16 %v685
        %v780 = vunpack.c.l.b16 %v686
        %v781 = vunpack.c.h.b16 %v686
        %v782 = vunpack.c.l.b16 %v687
        %v783 = vunpack.c.h.b16 %v687
        %v784 = vunpack.c.l.b16 %v688
        %v785 = vunpack.c.h.b16 %v688
        %v786 = vunpack.c.l.b16 %v689
        %v787 = vunpack.c.h.b16 %v689
        %v788 = vunpack.c.l.b16 %v690
        %v789 = vunpack.c.h.b16 %v690
        %v790 = vunpack.c.l.b16 %v691
        %v791 = vunpack.c.h.b16 %v691
        %v792 = vunpack.c.l.b16 %v692
        %v793 = vunpack.c.h.b16 %v692
        %v794 = vunpack.c.l.b16 %v693
        %v795 = vunpack.c.h.b16 %v693
        %v796 = vunpack.c.l.b16 %v694
        %v797 = vunpack.c.h.b16 %v694
        %v798 = vunpack.c.l.b16 %v695
        %v799 = vunpack.c.h.b16 %v695
        %v800 = vunpack.c.l.b16 %v696
        %v801 = vunpack.c.h.b16 %v696
        %v802 = vunpack.c.l.b16 %v697
        %v803 = vunpack.c.h.b16 %v697
        %v804 = vunpack.c.l.b16 %v698
        %v805 = vunpack.c.h.b16 %v698
        %v806 = vunpack.c.l.b16 %v699
        %v807 = vunpack.c.h.b16 %v699
        %v808 = vpack.c.b16 %v746, %v744
        %v809 = vpack.c.b16 %v747, %v745
        %v810 = vpack.c.b16 %v750, %v748
        %v811 = vpack.c.b16 %v751, %v749
        %v812 = vpack.c.b16 %v754, %v752
        %v813 = vpack.c.b16 %v755, %v753
        %v814 = vpack.c.b16 %v758, %v756
        %v815 = vpack.c.b16 %v759, %v757
        %v816 = vpack.c.b16 %v762, %v760
        %v817 = vpack.c.b16 %v763, %v761
        %v818 = vpack.c.b16 %v766, %v764
        %v819 = vpack.c.b16 %v767, %v765
        %v820 = vpack.c.b16 %v770, %v768
        %v821 = vpack.c.b16 %v771, %v769
        %v822 = vpack.c.b16 %v774, %v772
        %v823 = vpack.c.b16 %v775, %v773
        %v824 = vpack.c.b16 %v778, %v776
        %v825 = vpack.c.b16 %v779, %v777
        %v826 = vpack.c.b16 %v782, %v780
        %v827 = vpack.c.b16 %v783, %v781
        %v828 = vpack.c.b16 %v786, %v784
        %v829 = vpack.c.b16 %v787, %v785
        %v830 = vpack.c.b16 %v790, %v788
        %v831 = vpack.c.b16 %v791, %v789
        %v832 = vpack.c.b16 %v794, %v792
        %v833 = vpack.c.b16 %v795, %v793
        %v834 = vpack.c.b16 %v798, %v796
        %v835 = vpack.c.b16 %v799, %v797
        %v836 = vpack.c.b16 %v802, %v800
        %v837 = vpack.c.b16 %v803, %v801
        %v838 = vpack.c.b16 %v806, %v804
        %v839 = vpack.c.b16 %v807, %v805
        %872 = vmatprep.subr.bf16.mxu0 %v809
        %873 = vmatpush1.bf16.msra.mxu0 %v808
        %874 = vmatprep.subr.bf16.mxu0 %v811
        %875 = vmatpush1.bf16.msra.mxu0 %v810
        %876 = vmatprep.subr.bf16.mxu0 %v813
        %877 = vmatpush1.bf16.msra.mxu0 %v812
        %878 = vmatprep.subr.bf16.mxu0 %v815
        %879 = vmatpush1.bf16.msra.mxu0 %v814
        %880 = vmatprep.subr.bf16.mxu0 %v817
        %881 = vmatpush1.bf16.msra.mxu0 %v816
        %882 = vmatprep.subr.bf16.mxu0 %v819
        %883 = vmatpush1.bf16.msra.mxu0 %v818
        %884 = vmatprep.subr.bf16.mxu0 %v821
        %885 = vmatpush1.bf16.msra.mxu0 %v820
        %886 = vmatprep.subr.bf16.mxu0 %v823
        %887 = vmatpush1.bf16.msra.mxu0 %v822
        %888 = vmatprep.subr.bf16.mxu0 %v825
        %889 = vmatpush1.bf16.msra.mxu0 %v824
        %890 = vmatprep.subr.bf16.mxu0 %v827
        %891 = vmatpush1.bf16.msra.mxu0 %v826
        %892 = vmatprep.subr.bf16.mxu0 %v829
        %893 = vmatpush1.bf16.msra.mxu0 %v828
        %894 = vmatprep.subr.bf16.mxu0 %v831
        %895 = vmatpush1.bf16.msra.mxu0 %v830
        %896 = vmatprep.subr.bf16.mxu0 %v833
        %897 = vmatpush1.bf16.msra.mxu0 %v832
        %898 = vmatprep.subr.bf16.mxu0 %v835
        %899 = vmatpush1.bf16.msra.mxu0 %v834
        %900 = vmatprep.subr.bf16.mxu0 %v837
        %901 = vmatpush1.bf16.msra.mxu0 %v836
        %902 = vmatprep.subr.bf16.mxu0 %v839
        %903 = vmatpush1.bf16.msra.mxu0 %v838
        %904 = vmatprep.mubr.bf16.mxu0 %v667
        %905 = vmatmul.mubr.bf16.gmra.mrb[0].mxu0 %v666
        %v906 = vpop.f32.mrb[0].mxu0
        %v907 = vadd.f32 %v705, %v906
        %v908 = vpop.f32.mrb[0].mxu0
        %v909 = vadd.f32 %v709, %v908
        %v910 = vpop.f32.mrb[0].mxu0
        %v911 = vadd.f32 %v705, %v910
        %v912 = vpop.f32.mrb[0].mxu0
        %v913 = vadd.f32 %v709, %v912
        %914 = vdwg.mxu0
        %v915 = vmax.f32 %v907, 0.0
        %v916 = vmax.f32 %v909, 0.0
        %v917 = vmax.f32 %v911, 0.0
        %v918 = vmax.f32 %v913, 0.0
        %v919 = vpack.c.bf16 %v917, %v915
        %v920 = vpack.c.bf16 %v918, %v916
        %v921 = vld [vmem:[%s6] sm:$0xf]
        %v922 = vld [vmem:[%s6 + $0x4] sm:$0xf]
        %v923 = vld [vmem:[%s6 + $0x8] sm:$0xf]
        %v924 = vld [vmem:[%s6 + $0xc] sm:$0xf]
        %v925 = vld [vmem:[%s6 + $0x10] sm:$0xf]
        %v926 = vld [vmem:[%s6 + $0x14] sm:$0xf]
        %v927 = vld [vmem:[%s6 + $0x18] sm:$0xf]
        %v928 = vld [vmem:[%s6 + $0x1c] sm:$0xf]
        %v929 = vld [vmem:[%s6 + $0x20] sm:$0xf]
        %v930 = vld [vmem:[%s6 + $0x24] sm:$0xf]
        %v931 = vld [vmem:[%s6 + $0x28] sm:$0xf]
        %v932 = vld [vmem:[%s6 + $0x2c] sm:$0xf]
        %v933 = vld [vmem:[%s6 + $0x30] sm:$0xf]
        %v934 = vld [vmem:[%s6 + $0x34] sm:$0xf]
        %v935 = vld [vmem:[%s6 + $0x38] sm:$0xf]
        %v936 = vld [vmem:[%s6 + $0x3c] sm:$0xf]
        %v937 = vld [vmem:[%s6 + $0x40] sm:$0xf]
        %v938 = vld [vmem:[%s6 + $0x44] sm:$0xf]
        %v939 = vld [vmem:[%s6 + $0x48] sm:$0xf]
        %v940 = vld [vmem:[%s6 + $0x4c] sm:$0xf]
        %v941 = vld [vmem:[%s6 + $0x50] sm:$0xf]
        %v942 = vld [vmem:[%s6 + $0x54] sm:$0xf]
        %v943 = vld [vmem:[%s6 + $0x58] sm:$0xf]
        %v944 = vld [vmem:[%s6 + $0x5c] sm:$0xf]
        %v945 = vld [vmem:[%s6 + $0x60] sm:$0xf]
        %v946 = vld [vmem:[%s6 + $0x64] sm:$0xf]
        %v947 = vld [vmem:[%s6 + $0x68] sm:$0xf]
        %v948 = vld [vmem:[%s6 + $0x6c] sm:$0xf]
        %v949 = vld [vmem:[%s6 + $0x70] sm:$0xf]
        %v950 = vld [vmem:[%s6 + $0x74] sm:$0xf]
        %v951 = vld [vmem:[%s6 + $0x78] sm:$0xf]
        %v952 = vld [vmem:[%s6 + $0x7c] sm:$0xf]
        %v953 = vld [vmem:[%s7] sm:$0x1]
        %v955 = vlaneseq
        %v956 = vshrl.u32 %v955, 7
        %v957 = vsub.s32 0, %v956
        %v958 = vrot.slane %v953, %v957
        %v992 = vunpack.c.l.b16 %v921
        %v993 = vunpack.c.l.b16 %v922
        %v994 = vunpack.c.l.b16 %v923
        %v995 = vunpack.c.l.b16 %v924
        %v996 = vunpack.c.l.b16 %v925
        %v997 = vunpack.c.l.b16 %v926
        %v998 = vunpack.c.l.b16 %v927
        %v999 = vunpack.c.l.b16 %v928
        %v1000 = vunpack.c.l.b16 %v929
        %v1001 = vunpack.c.l.b16 %v930
        %v1002 = vunpack.c.l.b16 %v931
        %v1003 = vunpack.c.l.b16 %v932
        %v1004 = vunpack.c.l.b16 %v933
        %v1005 = vunpack.c.l.b16 %v934
        %v1006 = vunpack.c.l.b16 %v935
        %v1007 = vunpack.c.l.b16 %v936
        %v1008 = vunpack.c.l.b16 %v937
        %v1009 = vunpack.c.l.b16 %v938
        %v1010 = vunpack.c.l.b16 %v939
        %v1011 = vunpack.c.l.b16 %v940
        %v1012 = vunpack.c.l.b16 %v941
        %v1013 = vunpack.c.l.b16 %v942
        %v1014 = vunpack.c.l.b16 %v943
        %v1015 = vunpack.c.l.b16 %v944
        %v1016 = vunpack.c.l.b16 %v945
        %v1017 = vunpack.c.l.b16 %v946
        %v1018 = vunpack.c.l.b16 %v947
        %v1019 = vunpack.c.l.b16 %v948
        %v1020 = vunpack.c.l.b16 %v949
        %v1021 = vunpack.c.l.b16 %v950
        %v1022 = vunpack.c.l.b16 %v951
        %v1023 = vunpack.c.l.b16 %v952
        %v1024 = vpack.c.b16 %v993, %v992
        %v1025 = vpack.c.b16 %v995, %v994
        %v1026 = vpack.c.b16 %v997, %v996
        %v1027 = vpack.c.b16 %v999, %v998
        %v1028 = vpack.c.b16 %v1001, %v1000
        %v1029 = vpack.c.b16 %v1003, %v1002
        %v1030 = vpack.c.b16 %v1005, %v1004
        %v1031 = vpack.c.b16 %v1007, %v1006
        %v1032 = vpack.c.b16 %v1009, %v1008
        %v1033 = vpack.c.b16 %v1011, %v1010
        %v1034 = vpack.c.b16 %v1013, %v1012
        %v1035 = vpack.c.b16 %v1015, %v1014
        %v1036 = vpack.c.b16 %v1017, %v1016
        %v1037 = vpack.c.b16 %v1019, %v1018
        %v1038 = vpack.c.b16 %v1021, %v1020
        %v1039 = vpack.c.b16 %v1023, %v1022
        %1056 = vmatprep.subr.bf16.mxu0 0
        %1057 = vmatpush1.bf16.msra.mxu0 %v1024
        %1058 = vmatprep.subr.bf16.mxu0 0
        %1059 = vmatpush1.bf16.msra.mxu0 %v1025
        %1060 = vmatprep.subr.bf16.mxu0 0
        %1061 = vmatpush1.bf16.msra.mxu0 %v1026
        %1062 = vmatprep.subr.bf16.mxu0 0
        %1063 = vmatpush1.bf16.msra.mxu0 %v1027
        %1064 = vmatprep.subr.bf16.mxu0 0
        %1065 = vmatpush1.bf16.msra.mxu0 %v1028
        %1066 = vmatprep.subr.bf16.mxu0 0
        %1067 = vmatpush1.bf16.msra.mxu0 %v1029
        %1068 = vmatprep.subr.bf16.mxu0 0
        %1069 = vmatpush1.bf16.msra.mxu0 %v1030
        %1070 = vmatprep.subr.bf16.mxu0 0
        %1071 = vmatpush1.bf16.msra.mxu0 %v1031
        %1072 = vmatprep.subr.bf16.mxu0 0
        %1073 = vmatpush1.bf16.msra.mxu0 %v1032
        %1074 = vmatprep.subr.bf16.mxu0 0
        %1075 = vmatpush1.bf16.msra.mxu0 %v1033
        %1076 = vmatprep.subr.bf16.mxu0 0
        %1077 = vmatpush1.bf16.msra.mxu0 %v1034
        %1078 = vmatprep.subr.bf16.mxu0 0
        %1079 = vmatpush1.bf16.msra.mxu0 %v1035
        %1080 = vmatprep.subr.bf16.mxu0 0
        %1081 = vmatpush1.bf16.msra.mxu0 %v1036
        %1082 = vmatprep.subr.bf16.mxu0 0
        %1083 = vmatpush1.bf16.msra.mxu0 %v1037
        %1084 = vmatprep.subr.bf16.mxu0 0
        %1085 = vmatpush1.bf16.msra.mxu0 %v1038
        %1086 = vmatprep.subr.bf16.mxu0 0
        %1087 = vmatpush1.bf16.msra.mxu0 %v1039
        %1088 = vmatprep.mubr.bf16.mxu0 %v920
        %1089 = vmatmul.mubr.bf16.gmra.mrb[0].mxu0 %v919
        %v1090 = vpop.f32.mrb[0].mxu0
        %v1091 = vadd.f32 %v958, %v1090
        %v1092 = vpop.f32.mrb[0].mxu0
        %v1093 = vpop.f32.mrb[0].mxu0
        %v1094 = vadd.f32 %v958, %v1093
        %v1095 = vpop.f32.mrb[0].mxu0
        %1096 = vdwg.mxu0
        %v1097 = vxor.u32 %v1091, 2147483648
        %v1098 = vxor.u32 %v1094, 2147483648
        %v1099 = vmul.f32 %v1097, 1.442695
        %v1100 = vpow.pop %v1099
        %v1101 = vmul.f32 %v1098, 1.442695
        %v1102 = vpow.pop %v1101
        %v1103 = vadd.f32 %v1100, 1.0
        %v1104 = vadd.f32 %v1102, 1.0
        %v1105 = vrcp.pop %v1103
        %v1106 = vmul.f32 1.0, %v1105
        %v1107 = vrcp.pop %v1104
        %v1108 = vmul.f32 1.0, %v1107
        %vm1109 = vcmask 64512
        %1110 = vst.msk [vmem:[%s398] sm:$0xff] %vm1109, %v1106
        %1111 = vst.msk [vmem:[%s398 + $0x8] sm:$0xff] %vm1109, %v1108
        %s1112 = smul.u32 2, %s26
        %p1113 = scmp.lt.s32.totalorder %s1112, 15
        %s1114 = scalar_select %p1113, %s1112, 15
        %s1115 = smul.addr %s1114, 8
        %s1116 = scalar_lea.vmem %s8, %s1115
        // Predicated region
        $region69: #{tpu_custom_call.1} parent=51 // pred_check
          %p1117 = pneg %p222
        $region70: #{tpu_custom_call.1} parent=51 // pred_check_branch
          %1119 = sbr.rel (%p1117) target = $region72
        $region71: #{tpu_custom_call.1} parent=51 // pred_region
          %s1120 = smul.u32 2, %s26
        $region72: #{tpu_custom_call.1} parent=51 // pred_fallthru
          _
      $region52: #{tpu_custom_call.1} parent=5 // pred_fallthru
        _
      %p1121 = scmp.le.s32.totalorder 2, %s21
      // Predicated region
      $region73: #{tpu_custom_call.1} parent=5 // pred_check
        %p1122 = pneg %p1121
      $region74: #{tpu_custom_call.1} parent=5 // pred_check_branch
        %1124 = sbr.rel (%p1122) target = $region76
      $region75: #{tpu_custom_call.1} parent=5 // pred_region
        %s1125 = ssub.s32 %s21, 2
        // Predicated region
        $region77: #{tpu_custom_call.1} parent=75 // pred_check
          %p1126 = pneg %p228
        $region78: #{tpu_custom_call.1} parent=75 // pred_check_branch
          %1128 = sbr.rel (%p1126) target = $region80
        $region79: #{tpu_custom_call.1} parent=75 // pred_region
          %s1129 = smul.u32 2, %s27
          %p1130 = scmp.lt.s32.totalorder %s1129, 15
          %s1131 = scalar_select %p1130, %s1129, 15
          %s1132 = smul.addr %s1131, 8
          %s1133 = scalar_lea.vmem %s8, %s1132
        $region80: #{tpu_custom_call.1} parent=75 // pred_fallthru
          _
      $region76: #{tpu_custom_call.1} parent=5 // pred_fallthru
        _
    $region6: #{tpu_custom_call.1} parent=1 // loop_footer
      %s25 = sadd.s32 1, %s21
    $region7: #{tpu_custom_call.1} parent=1 // loop_footer_branch
      %20 = sbr.rel target = $region3
    $region8: #{tpu_custom_call.1} parent=1 // loop_exit
      _
    %1134 = vsyncpa [#allocation3], 1
    %s1135 = scalar_lea.sflag [#allocation3], 1
    %1136 = vsyncpa %s1135, 1
    %1137 = vsyncpa [#allocation5], 1
    %s1138 = scalar_lea.sflag [#allocation5], 1
    %1139 = vsyncpa %s1138, 1
    %1140 = vsyncpa [#allocation8], 1

</llo_original>
